<compile_context>
chip_gen: v5e
topology: v5e:2x2
jax: 0.10.0
libtpu: 0.0.40
codegen_flags: <defaults>
</compile_context>

<pallas_src>
import functools

import jax
import jax.numpy as jnp
from jax.experimental import pallas as pl
from jax.experimental.pallas import tpu as pltpu

INPUT_SIZE = 21
HIDDEN = 10
OUTPUT = 1


def _mlp_kernel(x_ref, w1_ref, b1_ref, w2_ref, b2_ref, w3_ref, b3_ref, o_ref, *, mm_dtype):
    # x_ref: (INPUT_SIZE, tile_b) fp32, batch on lanes.
    # Weights are PyTorch layout (out, in); biases are (out, 1) for lane broadcast.
    xt = x_ref[...].astype(mm_dtype)                                   # cast only at MXU boundary

    h = jnp.dot(w1_ref[...].astype(mm_dtype), xt,
                preferred_element_type=jnp.float32) + b1_ref[...]     # (HIDDEN, tile_b) f32
    h = h * h                                                          # square in fp32 (VPU)

    h = jnp.dot(w2_ref[...].astype(mm_dtype), h.astype(mm_dtype),
                preferred_element_type=jnp.float32) + b2_ref[...]     # (HIDDEN, tile_b)
    h = h * h

    y = jnp.dot(w3_ref[...].astype(mm_dtype), h.astype(mm_dtype),
                preferred_element_type=jnp.float32) + b3_ref[...]     # (OUTPUT, tile_b)
    o_ref[...] = y.astype(o_ref.dtype)                                 # lane-dense store


def neural_net2_forward(x, params, *, tile_b=512, matmul_dtype=jnp.bfloat16):
    """x: (B, INPUT_SIZE) float32. Returns (B, OUTPUT) float32."""
    w1, b1, w2, b2, w3, b3 = (
        params["w1"], params["b1"], params["w2"],
        params["b2"], params["w3"], params["b3"],
    )
    B, F = x.shape
    assert F == INPUT_SIZE

    # Lane tiles must be multiples of 128; don't let tile_b exceed the 128-padded batch
    # (avoids wasted padded compute for small batches).
    tile_b = max(128, (tile_b // 128) * 128)
    b_pad128 = pl.cdiv(B, 128) * 128
    tile_b = min(tile_b, b_pad128)

    # Ragged batch: pad up to a multiple of tile_b with zero rows, slice off at the end.
    n_tiles = pl.cdiv(B, tile_b)
    Bp = n_tiles * tile_b
    if Bp != B:
        x = jnp.pad(x, ((0, Bp - B), (0, 0)))
    x_t = x.T                                   # (INPUT_SIZE, Bp): batch on the lane axis

    def _full(shape):
        return pl.BlockSpec(shape, lambda i: (0,) * len(shape))

    flops = 2 * B * (INPUT_SIZE * HIDDEN + HIDDEN * HIDDEN + HIDDEN * OUTPUT)
    param_bytes = sum(int(a.size) * a.dtype.itemsize for a in (w1, b1, w2, b2, w3, b3))
    bytes_accessed = int(Bp * (INPUT_SIZE + OUTPUT) * 4 + param_bytes)

    out_t = pl.pallas_call(
        functools.partial(_mlp_kernel, mm_dtype=matmul_dtype),
        out_shape=jax.ShapeDtypeStruct((OUTPUT, Bp), jnp.float32),
        grid_spec=pltpu.PrefetchScalarGridSpec(
            num_scalar_prefetch=0,
            grid=(n_tiles,),
            in_specs=[
                pl.BlockSpec((INPUT_SIZE, tile_b), lambda i: (0, i)),   # x tile, lane-dense
                _full(w1.shape), _full(b1.shape),
                _full(w2.shape), _full(b2.shape),
                _full(w3.shape), _full(b3.shape),
            ],
            out_specs=pl.BlockSpec((OUTPUT, tile_b), lambda i: (0, i)),  # (1, tile_b) lane-dense
        ),
        compiler_params=pltpu.CompilerParams(
            dimension_semantics=("parallel",),   # batch axis shardable across v7x's 2 TCs
        ),
        cost_estimate=pl.CostEstimate(
            flops=flops, transcendentals=0, bytes_accessed=bytes_accessed),
    )(x_t, w1, b1, w2, b2, w3, b3)

    return out_t.T[:B]                           # (B, OUTPUT)


def init_params(key):
    """Deterministic init mirroring PyTorch Linear shapes: W is (out, in), b is (out, 1)."""
    k1, k2, k3, k4, k5, k6 = jax.random.split(key, 6)
    w1 = jax.random.normal(k1, (HIDDEN, INPUT_SIZE), jnp.float32) * 0.1
    b1 = jax.random.normal(k2, (HIDDEN, 1), jnp.float32) * 0.1
    w2 = jax.random.normal(k3, (HIDDEN, HIDDEN), jnp.float32) * 0.1
    b2 = jax.random.normal(k4, (HIDDEN, 1), jnp.float32) * 0.1
    w3 = jax.random.normal(k5, (OUTPUT, HIDDEN), jnp.float32) * 0.1
    b3 = jax.random.normal(k6, (OUTPUT, 1), jnp.float32) * 0.1
    return dict(w1=w1, b1=b1, w2=w2, b2=b2, w3=w3, b3=b3)


def reference_forward(x, p, matmul_dtype=jnp.float32):
    """Pure-JAX reference, optionally with the same bf16 MXU-boundary casts."""
    def lin(a, w, b):
        a = a.astype(matmul_dtype)
        w = w.astype(matmul_dtype)
        return jnp.dot(a, w.T, preferred_element_type=jnp.float32) + b.reshape(1, -1)
    h = lin(x, p["w1"], p["b1"]); h = h * h
    h = lin(h, p["w2"], p["b2"]); h = h * h
    return lin(h, p["w3"], p["b3"])


if __name__ == "__main__":
    key = jax.random.PRNGKey(0)
    kx, kp = jax.random.split(key)

    batch = 8  # small, deliberately not a multiple of 128 to exercise the ragged-batch path
    x = jax.random.normal(kx, (batch, INPUT_SIZE), jnp.float32)
    params = init_params(kp)

    # bf16-matmul path (default).
    out = neural_net2_forward(x, params, tile_b=128)
    out = jax.block_until_ready(out)
    assert out.shape == (batch, OUTPUT)

    ref_bf16 = reference_forward(x, params, matmul_dtype=jnp.bfloat16)
    assert jnp.allclose(out, ref_bf16, atol=1e-3, rtol=1e-3), "mismatch vs bf16-matmul reference"

    ref_f32 = reference_forward(x, params, matmul_dtype=jnp.float32)
    assert jnp.allclose(out, ref_f32, atol=5e-2, rtol=5e-2), "bf16 path drifted too far from fp32"

    # Pure fp32 kernel path: tight check against the fp32 reference.
    out_f32 = neural_net2_forward(x, params, tile_b=128, matmul_dtype=jnp.float32)
    out_f32 = jax.block_until_ready(out_f32)
    assert jnp.allclose(out_f32, ref_f32, atol=1e-4, rtol=1e-4), "mismatch vs fp32 reference"

    print("KERNEL_OK")
</pallas_src>

<mosaic_0001>
module attributes {stable_mosaic.version = 11 : i64} {
  func.func @_mlp_kernel(%arg0: i32, %arg1: memref<21x128xf32, #tpu.memory_space<vmem>>, %arg2: memref<10x21xf32, #tpu.memory_space<vmem>>, %arg3: memref<10x1xf32, #tpu.memory_space<vmem>>, %arg4: memref<10x10xf32, #tpu.memory_space<vmem>>, %arg5: memref<10x1xf32, #tpu.memory_space<vmem>>, %arg6: memref<1x10xf32, #tpu.memory_space<vmem>>, %arg7: memref<1x1xf32, #tpu.memory_space<vmem>>, %arg8: memref<1x128xf32, #tpu.memory_space<vmem>>) attributes {dimension_semantics = [#tpu.dimension_semantics<parallel>], iteration_bounds = array<i64: 1>, scalar_prefetch = 0 : i64, scratch_operands = 0 : i64, tpu.core_type = #tpu.core_type<tc>, window_params = [{transform_indices = @transform_0, window_bounds = array<i64: 21, 128>}, {pipeline_mode = #tpu.pipeline_mode<synchronous>, transform_indices = @transform_1, window_bounds = array<i64: 10, 21>}, {pipeline_mode = #tpu.pipeline_mode<synchronous>, transform_indices = @transform_2, window_bounds = array<i64: 10, 1>}, {pipeline_mode = #tpu.pipeline_mode<synchronous>, transform_indices = @transform_3, window_bounds = array<i64: 10, 10>}, {pipeline_mode = #tpu.pipeline_mode<synchronous>, transform_indices = @transform_4, window_bounds = array<i64: 10, 1>}, {pipeline_mode = #tpu.pipeline_mode<synchronous>, transform_indices = @transform_5, window_bounds = array<i64: 1, 10>}, {pipeline_mode = #tpu.pipeline_mode<synchronous>, transform_indices = @transform_6, window_bounds = array<i64: 1, 1>}, {transform_indices = @transform_7, window_bounds = array<i64: 1, 128>}]} {
    %c0 = arith.constant 0 : index
    %c0_0 = arith.constant 0 : index
    %0 = vector.load %arg1[%c0, %c0_0] : memref<21x128xf32, #tpu.memory_space<vmem>>, vector<21x128xf32>
    %1 = arith.truncf %0 : vector<21x128xf32> to vector<21x128xbf16>
    %c0_1 = arith.constant 0 : index
    %c0_2 = arith.constant 0 : index
    %2 = vector.load %arg2[%c0_1, %c0_2] : memref<10x21xf32, #tpu.memory_space<vmem>>, vector<10x21xf32>
    %3 = arith.truncf %2 : vector<10x21xf32> to vector<10x21xbf16>
    %cst = arith.constant dense<0.000000e+00> : vector<10x128xf32>
    %4 = tpu.matmul %3, %1, %cst {dimension_numbers = #tpu.dot_dimension_numbers<[1], [0], [0], [1], [0, 0, 1, 1], [], []>} : vector<10x21xbf16>, vector<21x128xbf16>, vector<10x128xf32> -> vector<10x128xf32>
    %c0_3 = arith.constant 0 : index
    %c0_4 = arith.constant 0 : index
    %5 = vector.load %arg3[%c0_3, %c0_4] : memref<10x1xf32, #tpu.memory_space<vmem>>, vector<10x1xf32>
    %6 = vector.broadcast %5 : vector<10x1xf32> to vector<10x128xf32>
    %7 = arith.addf %4, %6 : vector<10x128xf32>
    %8 = arith.mulf %7, %7 : vector<10x128xf32>
    %c0_5 = arith.constant 0 : index
    %c0_6 = arith.constant 0 : index
    %9 = vector.load %arg4[%c0_5, %c0_6] : memref<10x10xf32, #tpu.memory_space<vmem>>, vector<10x10xf32>
    %10 = arith.truncf %9 : vector<10x10xf32> to vector<10x10xbf16>
    %11 = arith.truncf %8 : vector<10x128xf32> to vector<10x128xbf16>
    %cst_7 = arith.constant dense<0.000000e+00> : vector<10x128xf32>
    %12 = tpu.matmul %10, %11, %cst_7 {dimension_numbers = #tpu.dot_dimension_numbers<[1], [0], [0], [1], [0, 0, 1, 1], [], []>} : vector<10x10xbf16>, vector<10x128xbf16>, vector<10x128xf32> -> vector<10x128xf32>
    %c0_8 = arith.constant 0 : index
    %c0_9 = arith.constant 0 : index
    %13 = vector.load %arg5[%c0_8, %c0_9] : memref<10x1xf32, #tpu.memory_space<vmem>>, vector<10x1xf32>
    %14 = vector.broadcast %13 : vector<10x1xf32> to vector<10x128xf32>
    %15 = arith.addf %12, %14 : vector<10x128xf32>
    %16 = arith.mulf %15, %15 : vector<10x128xf32>
    %c0_10 = arith.constant 0 : index
    %c0_11 = arith.constant 0 : index
    %17 = vector.load %arg6[%c0_10, %c0_11] : memref<1x10xf32, #tpu.memory_space<vmem>>, vector<1x10xf32>
    %18 = arith.truncf %17 : vector<1x10xf32> to vector<1x10xbf16>
    %19 = arith.truncf %16 : vector<10x128xf32> to vector<10x128xbf16>
    %cst_12 = arith.constant dense<0.000000e+00> : vector<1x128xf32>
    %20 = tpu.matmul %18, %19, %cst_12 {dimension_numbers = #tpu.dot_dimension_numbers<[1], [0], [0], [1], [0, 0, 1, 1], [], []>} : vector<1x10xbf16>, vector<10x128xbf16>, vector<1x128xf32> -> vector<1x128xf32>
    %c0_13 = arith.constant 0 : index
    %c0_14 = arith.constant 0 : index
    %21 = vector.load %arg7[%c0_13, %c0_14] : memref<1x1xf32, #tpu.memory_space<vmem>>, vector<1x1xf32>
    %22 = vector.broadcast %21 : vector<1x1xf32> to vector<1x128xf32>
    %23 = arith.addf %20, %22 : vector<1x128xf32>
    %c0_15 = arith.constant 0 : index
    %c0_16 = arith.constant 0 : index
    %24 = vector.load %arg8[%c0_15, %c0_16] : memref<1x128xf32, #tpu.memory_space<vmem>>, vector<1x128xf32>
    tpu.vector_store %arg8[%c0_15, %c0_16], %23 {strides = array<i32>} : memref<1x128xf32, #tpu.memory_space<vmem>>, vector<1x128xf32>,
    return
  }
  func.func @transform_0(%arg0: i32) -> (i32, i32) {
    %c0_i32 = arith.constant 0 : i32
    %c0_i32_0 = arith.constant 0 : i32
    return %c0_i32, %arg0 : i32, i32
  }
  func.func @transform_1(%arg0: i32) -> (i32, i32) {
    %c0_i32 = arith.constant 0 : i32
    %c0_i32_0 = arith.constant 0 : i32
    %c0_i32_1 = arith.constant 0 : i32
    return %c0_i32, %c0_i32_0 : i32, i32
  }
  func.func @transform_2(%arg0: i32) -> (i32, i32) {
    %c0_i32 = arith.constant 0 : i32
    %c0_i32_0 = arith.constant 0 : i32
    %c0_i32_1 = arith.constant 0 : i32
    return %c0_i32, %c0_i32_0 : i32, i32
  }
  func.func @transform_3(%arg0: i32) -> (i32, i32) {
    %c0_i32 = arith.constant 0 : i32
    %c0_i32_0 = arith.constant 0 : i32
    %c0_i32_1 = arith.constant 0 : i32
    return %c0_i32, %c0_i32_0 : i32, i32
  }
  func.func @transform_4(%arg0: i32) -> (i32, i32) {
    %c0_i32 = arith.constant 0 : i32
    %c0_i32_0 = arith.constant 0 : i32
    %c0_i32_1 = arith.constant 0 : i32
    return %c0_i32, %c0_i32_0 : i32, i32
  }
  func.func @transform_5(%arg0: i32) -> (i32, i32) {
    %c0_i32 = arith.constant 0 : i32
    %c0_i32_0 = arith.constant 0 : i32
    %c0_i32_1 = arith.constant 0 : i32
    return %c0_i32, %c0_i32_0 : i32, i32
  }
  func.func @transform_6(%arg0: i32) -> (i32, i32) {
    %c0_i32 = arith.constant 0 : i32
    %c0_i32_0 = arith.constant 0 : i32
    %c0_i32_1 = arith.constant 0 : i32
    return %c0_i32, %c0_i32_0 : i32, i32
  }
  func.func @transform_7(%arg0: i32) -> (i32, i32) {
    %c0_i32 = arith.constant 0 : i32
    %c0_i32_0 = arith.constant 0 : i32
    return %c0_i32, %arg0 : i32, i32
  }
}

</mosaic_0001>

<llo_original>
// kernel: tpu_custom_call.1
$region0: #{tpu_custom_call.1}
  #allocation0 [shape = 'u32[]', space=smem, size = 0x4, offset = 0x4, fixed_abs, tag = 'smem constant byte address 0x4 - core index']
  #allocation1 [shape = 'u32[72,128]{1,0:T(1,128)}', space=vmem, size = 0x9000, scoped, tag = 'internal scratch']
  #allocation2 [shape = 'f32[1,1]{1,0:T(1,128)S(1)}', space=vmem, size = 0x200, scoped, tag = 'scoped memory for tpu_custom_call.1']
  %s0 = inlined_call_operand.vmem [shape: f32[21,128], index: 0, kind: input, shape index: {}]
  %s1 = inlined_call_operand.hbm [shape: f32[10,21], index: 1, kind: input, shape index: {}]
  %s2 = inlined_call_operand.vmem [shape: f32[10,1], index: 2, kind: input, shape index: {}]
  %s3 = inlined_call_operand.hbm [shape: f32[10,10], index: 3, kind: input, shape index: {}]
  %s4 = inlined_call_operand.vmem [shape: f32[10,1], index: 4, kind: input, shape index: {}]
  %s5 = inlined_call_operand.vmem [shape: f32[1,10], index: 5, kind: input, shape index: {}]
  %s6 = inlined_call_operand.<no memory space> [shape: f32[1,1], index: 6, kind: input, shape index: {}]
  %s7 = inlined_call_operand.hbm [shape: f32[1,128], index: 7, kind: output, shape index: {}]
  %s8 = sld [smem:[#allocation0]]
  $region46: #{tpu_custom_call.1} parent=0
    _
  %s10 = ssub.s32 1, %s8
  %s11 = scalar_select 0, %s10, %s8
  %v12 = vstv %s6
  %13 = vst [vmem:[#allocation2] sm:$0x1] %v12
  $region1: #{tpu_custom_call.1} parent=0
    #allocation3 [shape = 'u8[8192]{0}', space=vmem, size = 0x2000, scoped, tag = 'input window, operand 1, single buffered']
    #allocation4 [shape = 's32[1]{0}', space=sflag, size = 0x4, scoped, tag = 'scoped memory for tpu_custom_call.1']
    #allocation5 [shape = 's32[1]{0}', space=sflag, size = 0x4, scoped, tag = 'scoped memory for tpu_custom_call.1']
    #allocation6 [shape = 'u8[8192]{0}', space=vmem, size = 0x2000, scoped, tag = 'input window, operand 3, single buffered']
    #allocation7 [shape = 's32[1]{0}', space=sflag, size = 0x4, scoped, tag = 'scoped memory for tpu_custom_call.1']
    #allocation8 [shape = 'u8[512]{0}', space=vmem, size = 0x400, scoped, tag = 'output window, operand 0, single buffered']
    %14 = vsyncpa [#allocation4], 0
    %15 = vsyncpa [#allocation7], 0
    %16 = vsyncpa [#allocation5], 0
    // Predicated region
    $region2: #{tpu_custom_call.1} parent=1 // pred_check
      _
    $region3: #{tpu_custom_call.1} parent=1 // pred_check_branch
      %18 = sbr.rel (0) target = $region5
    $region4: #{tpu_custom_call.1} parent=1 // pred_region
      _
    $region5: #{tpu_custom_call.1} parent=1 // pred_fallthru
      _
    // Predicated region
    $region6: #{tpu_custom_call.1} parent=1 // pred_check
      _
    $region7: #{tpu_custom_call.1} parent=1 // pred_check_branch
      %20 = sbr.rel (0) target = $region9
    $region8: #{tpu_custom_call.1} parent=1 // pred_region
      %22 = vsyncadd [#allocation4], 0
      %s23 = sshll.u32 %s1, 4
      %s24 = int_to_ptr.hbm [resolvable:$true] %s23
      %s25 = sshll.u32 [#allocation3], 4
      %s26 = int_to_ptr.vmem [resolvable:$true] %s25
      %31 = dma.hbm_to_vmem [thread:$0]  %s24, 256, %s26, [#allocation4], 128, 128, 8
    $region9: #{tpu_custom_call.1} parent=1 // pred_fallthru
      _
    // Predicated region
    $region10: #{tpu_custom_call.1} parent=1 // pred_check
      _
    $region11: #{tpu_custom_call.1} parent=1 // pred_check_branch
      %33 = sbr.rel (0) target = $region13
    $region12: #{tpu_custom_call.1} parent=1 // pred_region
      _
    $region13: #{tpu_custom_call.1} parent=1 // pred_fallthru
      _
    // Predicated region
    $region14: #{tpu_custom_call.1} parent=1 // pred_check
      _
    $region15: #{tpu_custom_call.1} parent=1 // pred_check_branch
      %35 = sbr.rel (0) target = $region17
    $region16: #{tpu_custom_call.1} parent=1 // pred_region
      %37 = vsyncadd [#allocation7], 0
      %s38 = sshll.u32 %s3, 4
      %s39 = int_to_ptr.hbm [resolvable:$true] %s38
      %s40 = sshll.u32 [#allocation6], 4
      %s41 = int_to_ptr.vmem [resolvable:$true] %s40
      %46 = dma.hbm_to_vmem [thread:$0]  %s39, 256, %s41, [#allocation7], 128, 128, 8
    $region17: #{tpu_custom_call.1} parent=1 // pred_fallthru
      _
    // Predicated region
    $region18: #{tpu_custom_call.1} parent=1 // pred_check
      _
    $region19: #{tpu_custom_call.1} parent=1 // pred_check_branch
      %48 = sbr.rel (0) target = $region21
    $region20: #{tpu_custom_call.1} parent=1 // pred_region
      _
    $region21: #{tpu_custom_call.1} parent=1 // pred_fallthru
      _
    // Predicated region
    $region22: #{tpu_custom_call.1} parent=1 // pred_check
      _
    $region23: #{tpu_custom_call.1} parent=1 // pred_check_branch
      %50 = sbr.rel (0) target = $region25
    $region24: #{tpu_custom_call.1} parent=1 // pred_region
      _
    $region25: #{tpu_custom_call.1} parent=1 // pred_fallthru
      _
    // Predicated region
    $region26: #{tpu_custom_call.1} parent=1 // pred_check
      _
    $region27: #{tpu_custom_call.1} parent=1 // pred_check_branch
      %52 = sbr.rel (0) target = $region29
    $region28: #{tpu_custom_call.1} parent=1 // pred_region
      _
    $region29: #{tpu_custom_call.1} parent=1 // pred_fallthru
      _
    // Predicated region
    $region30: #{tpu_custom_call.1} parent=1 // pred_check
      _
    $region31: #{tpu_custom_call.1} parent=1 // pred_check_branch
      %54 = sbr.rel (0) target = $region33
    $region32: #{tpu_custom_call.1} parent=1 // pred_region
      %56 = dma.done [#allocation4], 256
    $region33: #{tpu_custom_call.1} parent=1 // pred_fallthru
      _
    // Predicated region
    $region34: #{tpu_custom_call.1} parent=1 // pred_check
      _
    $region35: #{tpu_custom_call.1} parent=1 // pred_check_branch
      %58 = sbr.rel (0) target = $region37
    $region36: #{tpu_custom_call.1} parent=1 // pred_region
      %60 = dma.done [#allocation7], 256
    $region37: #{tpu_custom_call.1} parent=1 // pred_fallthru
      _
    %v62 = vld [vmem:[%s0] sm:$0xff]
    %v63 = vld [vmem:[%s0 + $0x8] sm:$0xff]
    %v64 = vld [vmem:[%s0 + $0x10] sm:$0x1f]
    %v65 = vpack.c.bf16 %v63, %v62
    %v66 = vpack.c.bf16 %v64, %v64
    %v67 = vld [vmem:[#allocation3] sm:$0xff]
    %v68 = vld [vmem:[#allocation3 + $0x8] sm:$0x3]
    %v69 = vpack.c.bf16 %v68, %v67
    %v70 = vld [vmem:[%s2] sm:$0xff]
    %v71 = vld [vmem:[%s2 + $0x8] sm:$0x3]
    %73 = vset.pattern.permute.xlu0 0
    %74 = vperm.xlu0 %73, %v70
    %v75 = vpop.permute.xlu0 %74
    %78 = vset.pattern.permute.xlu0 0
    %79 = vperm.xlu0 %78, %v71
    %v80 = vpop.permute.xlu0 %79
    %vm82 = vcmask 171008
    %v84 = vsel %vm82, %v69, 0
    %vm86 = vcmask 1041408
    %vm87 = vcmask 1042432
    %v88 = vsel %vm86, 4294967295, 65535
    %v89 = vsel %vm87, %v88, 0
    %v91 = vand.u32 %v66, %v89
    %93 = vmatpush.bf16.msra.mxu0 0
    %94 = vmatpush.bf16.msra.mxu0 0
    %95 = vmatpush.bf16.msra.mxu0 0
    %96 = vmatpush.bf16.msra.mxu0 0
    %97 = vmatpush.bf16.msra.mxu0 0
    %98 = vmatpush.bf16.msra.mxu0 0
    %99 = vmatpush.bf16.msra.mxu0 %v91
    %100 = vmatpush.bf16.msra.mxu0 %v65
    %101 = vmatmul.bf16.gmra.mxu0 %v84
    %v102 = vpop.f32.mrf.mxu0
    %v103 = vadd.f32 %v75, %v102
    %v104 = vpop.f32.mrf.mxu0
    %v105 = vadd.f32 %v80, %v104
    %106 = vdwg.mxu0
    %v107 = vmul.f32 %v103, %v103
    %v108 = vmul.f32 %v105, %v105
    %v109 = vld [vmem:[#allocation6] sm:$0xff]
    %v110 = vld [vmem:[#allocation6 + $0x8] sm:$0x3]
    %v111 = vpack.c.bf16 %v110, %v109
    %v112 = vpack.c.bf16 %v108, %v107
    %v113 = vld [vmem:[%s4] sm:$0xff]
    %v114 = vld [vmem:[%s4 + $0x8] sm:$0x3]
    %116 = vset.pattern.permute.xlu0 0
    %117 = vperm.xlu0 %116, %v113
    %v118 = vpop.permute.xlu0 %117
    %121 = vset.pattern.permute.xlu0 0
    %122 = vperm.xlu0 %121, %v114
    %v123 = vpop.permute.xlu0 %122
    %vm125 = vcmask 80896
    %v127 = vsel %vm125, %v111, 0
    %vm129 = vcmask 1044480
    %v131 = vsel %vm129, %v112, 0
    %133 = vmatpush.bf16.msra.mxu0 0
    %134 = vmatpush.bf16.msra.mxu0 0
    %135 = vmatpush.bf16.msra.mxu0 0
    %136 = vmatpush.bf16.msra.mxu0 0
    %137 = vmatpush.bf16.msra.mxu0 0
    %138 = vmatpush.bf16.msra.mxu0 0
    %139 = vmatpush.bf16.msra.mxu0 0
    %140 = vmatpush.bf16.msra.mxu0 %v131
    %141 = vmatmul.bf16.gmra.mxu0 %v127
    %v142 = vpop.f32.mrf.mxu0
    %v143 = vadd.f32 %v118, %v142
    %v144 = vpop.f32.mrf.mxu0
    %v145 = vadd.f32 %v123, %v144
    %146 = vdwg.mxu0
    %v147 = vmul.f32 %v143, %v143
    %v148 = vmul.f32 %v145, %v145
    %v149 = vld [vmem:[%s5] sm:$0x1]
    %v150 = vpack.c.bf16 %v149, %v149
    %v151 = vpack.c.bf16 %v148, %v147
    %v152 = vld [vmem:[#allocation2] sm:$0x1]
    %154 = vset.pattern.permute.xlu0 0
    %155 = vperm.xlu0 %154, %v152
    %v156 = vpop.permute.xlu0 %155
    %v158 = vperm.slane %v156, 0
    %v160 = vsel %vm125, %v150, 0
    %v163 = vsel %vm129, %v151, 0
    %165 = vmatpush.bf16.msra.mxu0 0
    %166 = vmatpush.bf16.msra.mxu0 0
    %167 = vmatpush.bf16.msra.mxu0 0
    %168 = vmatpush.bf16.msra.mxu0 0
    %169 = vmatpush.bf16.msra.mxu0 0
    %170 = vmatpush.bf16.msra.mxu0 0
    %171 = vmatpush.bf16.msra.mxu0 0
    %172 = vmatpush.bf16.msra.mxu0 %v163
    %173 = vmatmul.bf16.gmra.mxu0 %v160
    %v174 = vpop.f32.mrf.mxu0
    %v175 = vadd.f32 %v158, %v174
    %v176 = vpop.f32.mrf.mxu0
    %177 = vdwg.mxu0
    %178 = vst [vmem:[#allocation8] sm:$0x1] %v175
    // Predicated region
    $region38: #{tpu_custom_call.1} parent=1 // pred_check
      _
    $region39: #{tpu_custom_call.1} parent=1 // pred_check_branch
      %180 = sbr.rel (0) target = $region41
    $region40: #{tpu_custom_call.1} parent=1 // pred_region
      %182 = vsyncadd [#allocation5], 0
      %s184 = sshll.u32 [#allocation8], 4
      %s185 = int_to_ptr.vmem [resolvable:$true] %s184
      %s186 = sshll.u32 %s7, 4
      %s187 = int_to_ptr.hbm [resolvable:$true] %s186
      %189 = dma.vmem_to_hbm [thread:$0]  %s185, 16, %s187, [#allocation5]
    $region41: #{tpu_custom_call.1} parent=1 // pred_fallthru
      _
    // Predicated region
    $region42: #{tpu_custom_call.1} parent=1 // pred_check
      _
    $region43: #{tpu_custom_call.1} parent=1 // pred_check_branch
      %191 = sbr.rel (0) target = $region45
    $region44: #{tpu_custom_call.1} parent=1 // pred_region
      %193 = dma.done [#allocation5], 16
    $region45: #{tpu_custom_call.1} parent=1 // pred_fallthru
      _
    %194 = vsyncpa [#allocation4], 1
    %195 = vsyncpa [#allocation7], 1
    %196 = vsyncpa [#allocation5], 1

</llo_original>
